<compile_context>
chip_gen: v6e
topology: v6e:2x2x1
jax: 0.10.0
libtpu: 0.0.40
codegen_flags: <defaults>
</compile_context>

<pallas_src>
import functools

import jax
import jax.numpy as jnp
from jax.experimental import pallas as pl
from jax.experimental.pallas import tpu as pltpu


def lm_head_kernel(x_ref, w_ref, b_ref, o_ref):
    # x_ref: (B, E)   last-position embeddings (resident across the grid)
    # w_ref: (E, TV)  vocab tile of the transposed weight (double-buffered)
    # b_ref: (1, TV)  vocab tile of the bias
    # o_ref: (B, TV)  vocab tile of the logits (lane-dense stores)
    o_ref[...] = (
        jnp.dot(x_ref[...], w_ref[...], preferred_element_type=jnp.float32)
        + b_ref[...]
    ).astype(o_ref.dtype)


def _pick_vocab_tile(E: int, V: int, w_bytes: int, *,
                     max_tv: int = 4096,
                     weight_budget_bytes: int = 32 << 20) -> int:
    """Choose the vocab tile.

    If the whole vocab comfortably fits the VMEM weight budget, use a single
    full-extent block (no tiling, no masked tail).  Otherwise use the largest
    lane-aligned (multiple-of-128) tile whose double-buffered weight slab fits
    the budget; the budget is chosen to be safe on v5e/v6e/v7x VMEM.
    """
    if V <= max_tv and 2 * E * V * w_bytes <= weight_budget_bytes:
        return V
    tv = max(128, (min(max_tv, V) // 128) * 128)
    while tv > 128 and 2 * E * tv * w_bytes > weight_budget_bytes:
        tv -= 128
    return tv


@functools.partial(jax.jit, static_argnames=("out_dtype",))
def lm_head_forward(x, weight_t, bias, out_dtype=jnp.float32):
    """LMHead forward.

    x:        (B, T, E)  activations
    weight_t: (E, V)     nn.Linear weight, pre-transposed (PyTorch stores (V, E))
    bias:     (V,)       nn.Linear bias
    returns logits of shape (B, V) for the last sequence position.
    """
    B, T, E = x.shape
    Ew, V = weight_t.shape
    assert E == Ew and bias.shape == (V,)

    # Glue: select the last sequence position (x[:, -1, :] in the reference).
    x_last = x[:, -1, :]                                   # (B, E)
    bias2d = bias.reshape(1, V)                            # (1, V)

    w_bytes = jnp.dtype(weight_t.dtype).itemsize
    tv = _pick_vocab_tile(E, V, w_bytes)
    grid = (pl.cdiv(V, tv),)

    out = pl.pallas_call(
        lm_head_kernel,
        out_shape=jax.ShapeDtypeStruct((B, V), out_dtype),
        grid_spec=pl.GridSpec(
            grid=grid,
            in_specs=[
                # x is small and reused by every vocab tile: same block each step
                # (revisited block => no re-DMA).
                pl.BlockSpec((B, E), lambda j: (0, 0)),
                # Weight / bias / output stream along the vocab axis.
                pl.BlockSpec((E, tv), lambda j: (0, j)),
                pl.BlockSpec((1, tv), lambda j: (0, j)),
            ],
            out_specs=pl.BlockSpec((B, tv), lambda j: (0, j)),
        ),
        compiler_params=pltpu.CompilerParams(
            # Independent vocab tiles -> parallel axis (megacore sharding on
            # v7x; neutral on single-TC v5e/v6e).
            dimension_semantics=("parallel",),
            # Above the 16/32 MiB scoped defaults, below v7x's 64 MiB physical
            # per-TC VMEM; the tile picker keeps the weight double-buffer at
            # <= 32 MiB so everything (x, bias, output buffers) fits with room.
            vmem_limit_bytes=48 << 20,
        ),
    )(x_last, weight_t, bias2d)

    return out


if __name__ == "__main__":
    # Small shapes consistent with the module's forward.
    batch, seq, embedding_dimension, number_of_tokens = 2, 8, 32, 1000

    key = jax.random.PRNGKey(0)
    kx, kw, kb = jax.random.split(key, 3)

    x = jax.random.normal(
        kx, (batch, seq, embedding_dimension), dtype=jnp.float32)

    # Deterministic nn.Linear-style init: U(-1/sqrt(E), 1/sqrt(E)).
    bound = 1.0 / (embedding_dimension ** 0.5)
    # PyTorch stores weight as (V, E); the kernel consumes the transposed (E, V).
    weight = jax.random.uniform(
        kw, (number_of_tokens, embedding_dimension),
        minval=-bound, maxval=bound, dtype=jnp.float32)
    bias = jax.random.uniform(
        kb, (number_of_tokens,), minval=-bound, maxval=bound,
        dtype=jnp.float32)
    weight_t = weight.T                                    # (E, V)

    out = lm_head_forward(x, weight_t, bias)
    out = jax.block_until_ready(out)

    # Reference check in plain JAX (same semantics as the PyTorch forward).
    ref = x[:, -1, :] @ weight.T + bias
    assert out.shape == (batch, number_of_tokens)
    assert jnp.allclose(out, ref, atol=1e-5, rtol=1e-5)

    print("KERNEL_OK")
</pallas_src>

<mosaic_0001>
module attributes {stable_mosaic.version = 11 : i64} {
  func.func @lm_head_kernel(%arg0: i32, %arg1: memref<2x32xf32, #tpu.memory_space<vmem>>, %arg2: memref<32x1000xf32, #tpu.memory_space<vmem>>, %arg3: memref<1x1000xf32, #tpu.memory_space<vmem>>, %arg4: memref<2x1000xf32, #tpu.memory_space<vmem>>) attributes {dimension_semantics = [#tpu.dimension_semantics<parallel>], iteration_bounds = array<i64: 1>, scalar_prefetch = 0 : i64, scratch_operands = 0 : i64, tpu.core_type = #tpu.core_type<tc>, window_params = [{pipeline_mode = #tpu.pipeline_mode<synchronous>, transform_indices = @transform_0, window_bounds = array<i64: 2, 32>}, {transform_indices = @transform_1, window_bounds = array<i64: 32, 1000>}, {transform_indices = @transform_2, window_bounds = array<i64: 1, 1000>}, {transform_indices = @transform_3, window_bounds = array<i64: 2, 1000>}]} {
    %c0 = arith.constant 0 : index
    %c0_0 = arith.constant 0 : index
    %0 = vector.load %arg1[%c0, %c0_0] : memref<2x32xf32, #tpu.memory_space<vmem>>, vector<2x32xf32>
    %c0_1 = arith.constant 0 : index
    %c0_2 = arith.constant 0 : index
    %1 = vector.load %arg2[%c0_1, %c0_2] : memref<32x1000xf32, #tpu.memory_space<vmem>>, vector<32x1000xf32>
    %cst = arith.constant dense<0.000000e+00> : vector<2x1000xf32>
    %2 = tpu.matmul %0, %1, %cst {dimension_numbers = #tpu.dot_dimension_numbers<[1], [0], [0], [1], [0, 0, 1, 1], [], []>} : vector<2x32xf32>, vector<32x1000xf32>, vector<2x1000xf32> -> vector<2x1000xf32>
    %c0_3 = arith.constant 0 : index
    %c0_4 = arith.constant 0 : index
    %3 = vector.load %arg3[%c0_3, %c0_4] : memref<1x1000xf32, #tpu.memory_space<vmem>>, vector<1x1000xf32>
    %4 = vector.broadcast %3 : vector<1x1000xf32> to vector<2x1000xf32>
    %5 = arith.addf %2, %4 : vector<2x1000xf32>
    %c0_5 = arith.constant 0 : index
    %c0_6 = arith.constant 0 : index
    %6 = vector.load %arg4[%c0_5, %c0_6] : memref<2x1000xf32, #tpu.memory_space<vmem>>, vector<2x1000xf32>
    tpu.vector_store %arg4[%c0_5, %c0_6], %5 {strides = array<i32>} : memref<2x1000xf32, #tpu.memory_space<vmem>>, vector<2x1000xf32>,
    return
  }
  func.func @transform_0(%arg0: i32) -> (i32, i32) {
    %c0_i32 = arith.constant 0 : i32
    %c0_i32_0 = arith.constant 0 : i32
    %c0_i32_1 = arith.constant 0 : i32
    return %c0_i32, %c0_i32_0 : i32, i32
  }
  func.func @transform_1(%arg0: i32) -> (i32, i32) {
    %c0_i32 = arith.constant 0 : i32
    %c0_i32_0 = arith.constant 0 : i32
    return %c0_i32, %arg0 : i32, i32
  }
  func.func @transform_2(%arg0: i32) -> (i32, i32) {
    %c0_i32 = arith.constant 0 : i32
    %c0_i32_0 = arith.constant 0 : i32
    return %c0_i32, %arg0 : i32, i32
  }
  func.func @transform_3(%arg0: i32) -> (i32, i32) {
    %c0_i32 = arith.constant 0 : i32
    %c0_i32_0 = arith.constant 0 : i32
    return %c0_i32, %arg0 : i32, i32
  }
}

</mosaic_0001>

<llo_original>
// kernel: lm_head_forward.1
$region0: #{lm_head_forward.1}
  #allocation0 [shape = 'u32[]', space=smem, size = 0x4, offset = 0x4, fixed_abs, tag = 'smem constant byte address 0x4 - core index']
  #allocation1 [shape = 'u32[144,128]{1,0:T(1,128)}', space=vmem, size = 0x12000, scoped, tag = 'internal scratch']
  %s0 = inlined_call_operand.vmem [shape: f32[2,32], index: 0, kind: input, shape index: {}]
  %s1 = inlined_call_operand.hbm [shape: f32[32,1000], index: 1, kind: input, shape index: {}]
  %s2 = inlined_call_operand.vmem [shape: f32[1,1000], index: 2, kind: input, shape index: {}]
  %s3 = inlined_call_operand.hbm [shape: f32[2,1000], index: 3, kind: output, shape index: {}]
  %s4 = sld [smem:[#allocation0]]
  $region26: #{lm_head_forward.1} parent=0
    _
  %s6 = ssub.s32 1, %s4
  %s7 = scalar_select 0, %s6, %s4
  $region1: #{lm_head_forward.1} parent=0
    #allocation2 [shape = 'u8[131072]{0}', space=vmem, size = 0x20000, scoped, tag = 'input window, operand 1, single buffered']
    #allocation3 [shape = 's32[1]{0}', space=sflag, size = 0x4, scoped, tag = 'scoped memory for lm_head_forward.1']
    #allocation4 [shape = 's32[1]{0}', space=sflag, size = 0x4, scoped, tag = 'scoped memory for lm_head_forward.1']
    #allocation5 [shape = 'u8[8192]{0}', space=vmem, size = 0x2000, scoped, tag = 'output window, operand 0, single buffered']
    %8 = vsyncpa [#allocation3], 0
    %9 = vsyncpa [#allocation4], 0
    // Predicated region
    $region2: #{lm_head_forward.1} parent=1 // pred_check
      _
    $region3: #{lm_head_forward.1} parent=1 // pred_check_branch
      %11 = sbr.rel (0) target = $region5
    $region4: #{lm_head_forward.1} parent=1 // pred_region
      _
    $region5: #{lm_head_forward.1} parent=1 // pred_fallthru
      _
    // Predicated region
    $region6: #{lm_head_forward.1} parent=1 // pred_check
      _
    $region7: #{lm_head_forward.1} parent=1 // pred_check_branch
      %13 = sbr.rel (0) target = $region9
    $region8: #{lm_head_forward.1} parent=1 // pred_region
      %s15 = ssub.s32 4096, 4096
      %16 = vsyncadd [#allocation3], %s15
      %s17 = sshll.u32 [#allocation2], 4
      %s18 = int_to_ptr.vmem [resolvable:$true] %s17
      %23 = dma.hbm_to_vmem [thread:$0]  %s1, 4096, %s18, [#allocation3], 1024, 1024, 64
    $region9: #{lm_head_forward.1} parent=1 // pred_fallthru
      _
    // Predicated region
    $region10: #{lm_head_forward.1} parent=1 // pred_check
      _
    $region11: #{lm_head_forward.1} parent=1 // pred_check_branch
      %25 = sbr.rel (0) target = $region13
    $region12: #{lm_head_forward.1} parent=1 // pred_region
      _
    $region13: #{lm_head_forward.1} parent=1 // pred_fallthru
      _
    // Predicated region
    $region14: #{lm_head_forward.1} parent=1 // pred_check
      _
    $region15: #{lm_head_forward.1} parent=1 // pred_check_branch
      %27 = sbr.rel (0) target = $region17
    $region16: #{lm_head_forward.1} parent=1 // pred_region
      %28 = dma.done [#allocation3], 4096
    $region17: #{lm_head_forward.1} parent=1 // pred_fallthru
      _
    %v29 = vld [vmem:[%s0] sm:$0x3]
    %v30 = vld [vmem:[#allocation2] sm:$0xff]
    %v31 = vld [vmem:[#allocation2 + $0x8] sm:$0xff]
    %v32 = vld [vmem:[#allocation2 + $0x10] sm:$0xff]
    %v33 = vld [vmem:[#allocation2 + $0x18] sm:$0xff]
    %v34 = vld [vmem:[#allocation2 + $0x20] sm:$0xff]
    %v35 = vld [vmem:[#allocation2 + $0x28] sm:$0xff]
    %v36 = vld [vmem:[#allocation2 + $0x30] sm:$0xff]
    %v37 = vld [vmem:[#allocation2 + $0x38] sm:$0xff]
    %v38 = vld [vmem:[#allocation2 + $0x40] sm:$0xff]
    %v39 = vld [vmem:[#allocation2 + $0x48] sm:$0xff]
    %v40 = vld [vmem:[#allocation2 + $0x50] sm:$0xff]
    %v41 = vld [vmem:[#allocation2 + $0x58] sm:$0xff]
    %v42 = vld [vmem:[#allocation2 + $0x60] sm:$0xff]
    %v43 = vld [vmem:[#allocation2 + $0x68] sm:$0xff]
    %v44 = vld [vmem:[#allocation2 + $0x70] sm:$0xff]
    %v45 = vld [vmem:[#allocation2 + $0x78] sm:$0xff]
    %v46 = vld [vmem:[#allocation2 + $0x80] sm:$0xff]
    %v47 = vld [vmem:[#allocation2 + $0x88] sm:$0xff]
    %v48 = vld [vmem:[#allocation2 + $0x90] sm:$0xff]
    %v49 = vld [vmem:[#allocation2 + $0x98] sm:$0xff]
    %v50 = vld [vmem:[#allocation2 + $0xa0] sm:$0xff]
    %v51 = vld [vmem:[#allocation2 + $0xa8] sm:$0xff]
    %v52 = vld [vmem:[#allocation2 + $0xb0] sm:$0xff]
    %v53 = vld [vmem:[#allocation2 + $0xb8] sm:$0xff]
    %v54 = vld [vmem:[#allocation2 + $0xc0] sm:$0xff]
    %v55 = vld [vmem:[#allocation2 + $0xc8] sm:$0xff]
    %v56 = vld [vmem:[#allocation2 + $0xd0] sm:$0xff]
    %v57 = vld [vmem:[#allocation2 + $0xd8] sm:$0xff]
    %v58 = vld [vmem:[#allocation2 + $0xe0] sm:$0xff]
    %v59 = vld [vmem:[#allocation2 + $0xe8] sm:$0xff]
    %v60 = vld [vmem:[#allocation2 + $0xf0] sm:$0xff]
    %v61 = vld [vmem:[#allocation2 + $0xf8] sm:$0xff]
    %v62 = vld [vmem:[%s2] sm:$0xff]
    %v64 = vlaneseq
    %v65 = vshrl.u32 %v64, 7
    %v66 = vsub.s32 0, %v65
    %v67 = vrot.slane %v62, %v66
    %v68 = vlaneseq
    %v69 = vshrl.u32 %v68, 7
    %v70 = vsub.s32 1, %v69
    %v71 = vrot.slane %v62, %v70
    %v72 = vlaneseq
    %v73 = vshrl.u32 %v72, 7
    %v74 = vsub.s32 2, %v73
    %v75 = vrot.slane %v62, %v74
    %v76 = vlaneseq
    %v77 = vshrl.u32 %v76, 7
    %v78 = vsub.s32 3, %v77
    %v79 = vrot.slane %v62, %v78
    %v80 = vlaneseq
    %v81 = vshrl.u32 %v80, 7
    %v82 = vsub.s32 4, %v81
    %v83 = vrot.slane %v62, %v82
    %v84 = vlaneseq
    %v85 = vshrl.u32 %v84, 7
    %v86 = vsub.s32 5, %v85
    %v87 = vrot.slane %v62, %v86
    %v88 = vlaneseq
    %v89 = vshrl.u32 %v88, 7
    %v90 = vsub.s32 6, %v89
    %v91 = vrot.slane %v62, %v90
    %v92 = vlaneseq
    %v93 = vshrl.u32 %v92, 7
    %v94 = vsub.s32 7, %v93
    %v95 = vrot.slane %v62, %v94
    %vm104 = vcmask 261120
    %v106 = vsel %vm104, %v29, 0
    %108 = vmatprep.subr.mxu0 0.0
    %109 = vmatpush1.msra.mxu0 0.0
    %110 = vmatprep.subr.mxu0 0.0
    %111 = vmatpush1.msra.mxu0 0.0
    %112 = vmatprep.subr.mxu0 0.0
    %113 = vmatpush1.msra.mxu0 0.0
    %114 = vmatprep.subr.mxu0 0.0
    %115 = vmatpush1.msra.mxu0 0.0
    %116 = vmatprep.subr.mxu0 0.0
    %117 = vmatpush1.msra.mxu0 0.0
    %118 = vmatprep.subr.mxu0 0.0
    %119 = vmatpush1.msra.mxu0 0.0
    %120 = vmatprep.subr.mxu0 0.0
    %121 = vmatpush1.msra.mxu0 0.0
    %122 = vmatprep.subr.mxu0 0.0
    %123 = vmatpush1.msra.mxu0 0.0
    %124 = vmatprep.subr.mxu0 0.0
    %125 = vmatpush1.msra.mxu0 0.0
    %126 = vmatprep.subr.mxu0 0.0
    %127 = vmatpush1.msra.mxu0 0.0
    %128 = vmatprep.subr.mxu0 0.0
    %129 = vmatpush1.msra.mxu0 0.0
    %130 = vmatprep.subr.mxu0 0.0
    %131 = vmatpush1.msra.mxu0 0.0
    %132 = vmatprep.subr.mxu0 %v55
    %133 = vmatpush1.msra.mxu0 %v54
    %134 = vmatprep.subr.mxu0 %v47
    %135 = vmatpush1.msra.mxu0 %v46
    %136 = vmatprep.subr.mxu0 %v39
    %137 = vmatpush1.msra.mxu0 %v38
    %138 = vmatprep.subr.mxu0 %v31
    %139 = vmatpush1.msra.mxu0 %v30
    %140 = vmatprep.subr.mxu0 0.0
    %141 = vmatpush2.msra.mxu0 0.0
    %142 = vmatprep.subr.mxu0 0.0
    %143 = vmatpush2.msra.mxu0 0.0
    %144 = vmatprep.subr.mxu0 0.0
    %145 = vmatpush2.msra.mxu0 0.0
    %146 = vmatprep.subr.mxu0 0.0
    %147 = vmatpush2.msra.mxu0 0.0
    %148 = vmatprep.subr.mxu0 0.0
    %149 = vmatpush2.msra.mxu0 0.0
    %150 = vmatprep.subr.mxu0 0.0
    %151 = vmatpush2.msra.mxu0 0.0
    %152 = vmatprep.subr.mxu0 0.0
    %153 = vmatpush2.msra.mxu0 0.0
    %154 = vmatprep.subr.mxu0 0.0
    %155 = vmatpush2.msra.mxu0 0.0
    %156 = vmatprep.subr.mxu0 0.0
    %157 = vmatpush2.msra.mxu0 0.0
    %158 = vmatprep.subr.mxu0 0.0
    %159 = vmatpush2.msra.mxu0 0.0
    %160 = vmatprep.subr.mxu0 0.0
    %161 = vmatpush2.msra.mxu0 0.0
    %162 = vmatprep.subr.mxu0 0.0
    %163 = vmatpush2.msra.mxu0 0.0
    %164 = vmatprep.subr.mxu0 0.0
    %165 = vmatpush2.msra.mxu0 0.0
    %166 = vmatprep.subr.mxu0 0.0
    %167 = vmatpush2.msra.mxu0 0.0
    %168 = vmatprep.subr.mxu0 0.0
    %169 = vmatpush2.msra.mxu0 0.0
    %170 = vmatprep.subr.mxu0 0.0
    %171 = vmatpush2.msra.mxu0 0.0
    %172 = vmatprep.mubr.f32.mxu0 0.0
    %173 = vmatmul.mubr.f32.gmra.mxu0 %v106
    %v174 = vpop.f32.mrf.mxu0
    %v175 = vadd.f32 %v67, %v174
    %v176 = vpop.f32.mrf.mxu0
    %v177 = vadd.f32 %v71, %v176
    %178 = vdwg.mxu0
    %179 = vmatprep.subr.mxu0 0.0
    %180 = vmatpush1.msra.mxu0 0.0
    %181 = vmatprep.subr.mxu0 0.0
    %182 = vmatpush1.msra.mxu0 0.0
    %183 = vmatprep.subr.mxu0 0.0
    %184 = vmatpush1.msra.mxu0 0.0
    %185 = vmatprep.subr.mxu0 0.0
    %186 = vmatpush1.msra.mxu0 0.0
    %187 = vmatprep.subr.mxu0 0.0
    %188 = vmatpush1.msra.mxu0 0.0
    %189 = vmatprep.subr.mxu0 0.0
    %190 = vmatpush1.msra.mxu0 0.0
    %191 = vmatprep.subr.mxu0 0.0
    %192 = vmatpush1.msra.mxu0 0.0
    %193 = vmatprep.subr.mxu0 0.0
    %194 = vmatpush1.msra.mxu0 0.0
    %195 = vmatprep.subr.mxu0 0.0
    %196 = vmatpush1.msra.mxu0 0.0
    %197 = vmatprep.subr.mxu0 0.0
    %198 = vmatpush1.msra.mxu0 0.0
    %199 = vmatprep.subr.mxu0 0.0
    %200 = vmatpush1.msra.mxu0 0.0
    %201 = vmatprep.subr.mxu0 0.0
    %202 = vmatpush1.msra.mxu0 0.0
    %203 = vmatprep.subr.mxu0 %v57
    %204 = vmatpush1.msra.mxu0 %v56
    %205 = vmatprep.subr.mxu0 %v49
    %206 = vmatpush1.msra.mxu0 %v48
    %207 = vmatprep.subr.mxu0 %v41
    %208 = vmatpush1.msra.mxu0 %v40
    %209 = vmatprep.subr.mxu0 %v33
    %210 = vmatpush1.msra.mxu0 %v32
    %211 = vmatprep.subr.mxu0 0.0
    %212 = vmatpush2.msra.mxu0 0.0
    %213 = vmatprep.subr.mxu0 0.0
    %214 = vmatpush2.msra.mxu0 0.0
    %215 = vmatprep.subr.mxu0 0.0
    %216 = vmatpush2.msra.mxu0 0.0
    %217 = vmatprep.subr.mxu0 0.0
    %218 = vmatpush2.msra.mxu0 0.0
    %219 = vmatprep.subr.mxu0 0.0
    %220 = vmatpush2.msra.mxu0 0.0
    %221 = vmatprep.subr.mxu0 0.0
    %222 = vmatpush2.msra.mxu0 0.0
    %223 = vmatprep.subr.mxu0 0.0
    %224 = vmatpush2.msra.mxu0 0.0
    %225 = vmatprep.subr.mxu0 0.0
    %226 = vmatpush2.msra.mxu0 0.0
    %227 = vmatprep.subr.mxu0 0.0
    %228 = vmatpush2.msra.mxu0 0.0
    %229 = vmatprep.subr.mxu0 0.0
    %230 = vmatpush2.msra.mxu0 0.0
    %231 = vmatprep.subr.mxu0 0.0
    %232 = vmatpush2.msra.mxu0 0.0
    %233 = vmatprep.subr.mxu0 0.0
    %234 = vmatpush2.msra.mxu0 0.0
    %235 = vmatprep.subr.mxu0 0.0
    %236 = vmatpush2.msra.mxu0 0.0
    %237 = vmatprep.subr.mxu0 0.0
    %238 = vmatpush2.msra.mxu0 0.0
    %239 = vmatprep.subr.mxu0 0.0
    %240 = vmatpush2.msra.mxu0 0.0
    %241 = vmatprep.subr.mxu0 0.0
    %242 = vmatpush2.msra.mxu0 0.0
    %243 = vmatprep.mubr.f32.mxu0 0.0
    %244 = vmatmul.mubr.f32.gmra.mxu0 %v106
    %v245 = vpop.f32.mrf.mxu0
    %v246 = vadd.f32 %v75, %v245
    %v247 = vpop.f32.mrf.mxu0
    %v248 = vadd.f32 %v79, %v247
    %249 = vdwg.mxu0
    %250 = vmatprep.subr.mxu0 0.0
    %251 = vmatpush1.msra.mxu0 0.0
    %252 = vmatprep.subr.mxu0 0.0
    %253 = vmatpush1.msra.mxu0 0.0
    %254 = vmatprep.subr.mxu0 0.0
    %255 = vmatpush1.msra.mxu0 0.0
    %256 = vmatprep.subr.mxu0 0.0
    %257 = vmatpush1.msra.mxu0 0.0
    %258 = vmatprep.subr.mxu0 0.0
    %259 = vmatpush1.msra.mxu0 0.0
    %260 = vmatprep.subr.mxu0 0.0
    %261 = vmatpush1.msra.mxu0 0.0
    %262 = vmatprep.subr.mxu0 0.0
    %263 = vmatpush1.msra.mxu0 0.0
    %264 = vmatprep.subr.mxu0 0.0
    %265 = vmatpush1.msra.mxu0 0.0
    %266 = vmatprep.subr.mxu0 0.0
    %267 = vmatpush1.msra.mxu0 0.0
    %268 = vmatprep.subr.mxu0 0.0
    %269 = vmatpush1.msra.mxu0 0.0
    %270 = vmatprep.subr.mxu0 0.0
    %271 = vmatpush1.msra.mxu0 0.0
    %272 = vmatprep.subr.mxu0 0.0
    %273 = vmatpush1.msra.mxu0 0.0
    %274 = vmatprep.subr.mxu0 %v59
    %275 = vmatpush1.msra.mxu0 %v58
    %276 = vmatprep.subr.mxu0 %v51
    %277 = vmatpush1.msra.mxu0 %v50
    %278 = vmatprep.subr.mxu0 %v43
    %279 = vmatpush1.msra.mxu0 %v42
    %280 = vmatprep.subr.mxu0 %v35
    %281 = vmatpush1.msra.mxu0 %v34
    %282 = vmatprep.subr.mxu0 0.0
    %283 = vmatpush2.msra.mxu0 0.0
    %284 = vmatprep.subr.mxu0 0.0
    %285 = vmatpush2.msra.mxu0 0.0
    %286 = vmatprep.subr.mxu0 0.0
    %287 = vmatpush2.msra.mxu0 0.0
    %288 = vmatprep.subr.mxu0 0.0
    %289 = vmatpush2.msra.mxu0 0.0
    %290 = vmatprep.subr.mxu0 0.0
    %291 = vmatpush2.msra.mxu0 0.0
    %292 = vmatprep.subr.mxu0 0.0
    %293 = vmatpush2.msra.mxu0 0.0
    %294 = vmatprep.subr.mxu0 0.0
    %295 = vmatpush2.msra.mxu0 0.0
    %296 = vmatprep.subr.mxu0 0.0
    %297 = vmatpush2.msra.mxu0 0.0
    %298 = vmatprep.subr.mxu0 0.0
    %299 = vmatpush2.msra.mxu0 0.0
    %300 = vmatprep.subr.mxu0 0.0
    %301 = vmatpush2.msra.mxu0 0.0
    %302 = vmatprep.subr.mxu0 0.0
    %303 = vmatpush2.msra.mxu0 0.0
    %304 = vmatprep.subr.mxu0 0.0
    %305 = vmatpush2.msra.mxu0 0.0
    %306 = vmatprep.subr.mxu0 0.0
    %307 = vmatpush2.msra.mxu0 0.0
    %308 = vmatprep.subr.mxu0 0.0
    %309 = vmatpush2.msra.mxu0 0.0
    %310 = vmatprep.subr.mxu0 0.0
    %311 = vmatpush2.msra.mxu0 0.0
    %312 = vmatprep.subr.mxu0 0.0
    %313 = vmatpush2.msra.mxu0 0.0
    %314 = vmatprep.mubr.f32.mxu0 0.0
    %315 = vmatmul.mubr.f32.gmra.mxu0 %v106
    %v316 = vpop.f32.mrf.mxu0
    %v317 = vadd.f32 %v83, %v316
    %v318 = vpop.f32.mrf.mxu0
    %v319 = vadd.f32 %v87, %v318
    %320 = vdwg.mxu0
    %321 = vmatprep.subr.mxu0 0.0
    %322 = vmatpush1.msra.mxu0 0.0
    %323 = vmatprep.subr.mxu0 0.0
    %324 = vmatpush1.msra.mxu0 0.0
    %325 = vmatprep.subr.mxu0 0.0
    %326 = vmatpush1.msra.mxu0 0.0
    %327 = vmatprep.subr.mxu0 0.0
    %328 = vmatpush1.msra.mxu0 0.0
    %329 = vmatprep.subr.mxu0 0.0
    %330 = vmatpush1.msra.mxu0 0.0
    %331 = vmatprep.subr.mxu0 0.0
    %332 = vmatpush1.msra.mxu0 0.0
    %333 = vmatprep.subr.mxu0 0.0
    %334 = vmatpush1.msra.mxu0 0.0
    %335 = vmatprep.subr.mxu0 0.0
    %336 = vmatpush1.msra.mxu0 0.0
    %337 = vmatprep.subr.mxu0 0.0
    %338 = vmatpush1.msra.mxu0 0.0
    %339 = vmatprep.subr.mxu0 0.0
    %340 = vmatpush1.msra.mxu0 0.0
    %341 = vmatprep.subr.mxu0 0.0
    %342 = vmatpush1.msra.mxu0 0.0
    %343 = vmatprep.subr.mxu0 0.0
    %344 = vmatpush1.msra.mxu0 0.0
    %345 = vmatprep.subr.mxu0 %v61
    %346 = vmatpush1.msra.mxu0 %v60
    %347 = vmatprep.subr.mxu0 %v53
    %348 = vmatpush1.msra.mxu0 %v52
    %349 = vmatprep.subr.mxu0 %v45
    %350 = vmatpush1.msra.mxu0 %v44
    %351 = vmatprep.subr.mxu0 %v37
    %352 = vmatpush1.msra.mxu0 %v36
    %353 = vmatprep.subr.mxu0 0.0
    %354 = vmatpush2.msra.mxu0 0.0
    %355 = vmatprep.subr.mxu0 0.0
    %356 = vmatpush2.msra.mxu0 0.0
    %357 = vmatprep.subr.mxu0 0.0
    %358 = vmatpush2.msra.mxu0 0.0
    %359 = vmatprep.subr.mxu0 0.0
    %360 = vmatpush2.msra.mxu0 0.0
    %361 = vmatprep.subr.mxu0 0.0
    %362 = vmatpush2.msra.mxu0 0.0
    %363 = vmatprep.subr.mxu0 0.0
    %364 = vmatpush2.msra.mxu0 0.0
    %365 = vmatprep.subr.mxu0 0.0
    %366 = vmatpush2.msra.mxu0 0.0
    %367 = vmatprep.subr.mxu0 0.0
    %368 = vmatpush2.msra.mxu0 0.0
    %369 = vmatprep.subr.mxu0 0.0
    %370 = vmatpush2.msra.mxu0 0.0
    %371 = vmatprep.subr.mxu0 0.0
    %372 = vmatpush2.msra.mxu0 0.0
    %373 = vmatprep.subr.mxu0 0.0
    %374 = vmatpush2.msra.mxu0 0.0
    %375 = vmatprep.subr.mxu0 0.0
    %376 = vmatpush2.msra.mxu0 0.0
    %377 = vmatprep.subr.mxu0 0.0
    %378 = vmatpush2.msra.mxu0 0.0
    %379 = vmatprep.subr.mxu0 0.0
    %380 = vmatpush2.msra.mxu0 0.0
    %381 = vmatprep.subr.mxu0 0.0
    %382 = vmatpush2.msra.mxu0 0.0
    %383 = vmatprep.subr.mxu0 0.0
    %384 = vmatpush2.msra.mxu0 0.0
    %385 = vmatprep.mubr.f32.mxu0 0.0
    %386 = vmatmul.mubr.f32.gmra.mxu0 %v106
    %v387 = vpop.f32.mrf.mxu0
    %v388 = vadd.f32 %v91, %v387
    %v389 = vpop.f32.mrf.mxu0
    %v390 = vadd.f32 %v95, %v389
    %391 = vdwg.mxu0
    %v400 = vcombine.low %v175, %v177
    %v401 = vcombine.low %v246, %v248
    %v403 = vunpack.c.l.s4 1983009808
    %v404 = vunpack.c.0.s8 %v403
    %v405 = vlaneseq
    %v406 = vshrl.u32 %v405, 7
    %v407 = vsub.s32 %v404, %v406
    %v408 = vrot.slane %v400, %v407
    %v410 = vunpack.c.l.s4 1983009808
    %v411 = vunpack.c.0.s8 %v410
    %v412 = vlaneseq
    %v413 = vshrl.u32 %v412, 7
    %v414 = vsub.s32 %v411, %v413
    %v415 = vrot.slane %v401, %v414
    %v416 = vcombine.low %v408, %v415
    %v417 = vcombine.low %v317, %v319
    %v418 = vcombine.low %v388, %v390
    %v420 = vunpack.c.l.s4 1983009808
    %v421 = vunpack.c.0.s8 %v420
    %v422 = vlaneseq
    %v423 = vshrl.u32 %v422, 7
    %v424 = vsub.s32 %v421, %v423
    %v425 = vrot.slane %v417, %v424
    %v427 = vunpack.c.l.s4 1983009808
    %v428 = vunpack.c.0.s8 %v427
    %v429 = vlaneseq
    %v430 = vshrl.u32 %v429, 7
    %v431 = vsub.s32 %v428, %v430
    %v432 = vrot.slane %v418, %v431
    %v433 = vcombine.low %v425, %v432
    %436 = vst [vmem:[#allocation5] sm:$0xff] %v416
    %vm437 = vcmask 1041408
    %vm438 = vcmask 1043458
    %vm439 = vmor %vm438, %vm437
    %vm440 = vcmask 1045508
    %vm441 = vmor %vm440, %vm439
    %vm442 = vcmask 850950
    %vm443 = vmor %vm442, %vm441
    %444 = vst.msk [vmem:[#allocation5 + $0x8] sm:$0xff] %vm443, %v433
    // Predicated region
    $region18: #{lm_head_forward.1} parent=1 // pred_check
      _
    $region19: #{lm_head_forward.1} parent=1 // pred_check_branch
      %446 = sbr.rel (0) target = $region21
    $region20: #{lm_head_forward.1} parent=1 // pred_region
      %s448 = ssub.s32 256, 256
      %449 = vsyncadd [#allocation4], %s448
      %s451 = sshll.u32 [#allocation5], 4
      %s452 = int_to_ptr.vmem [resolvable:$true] %s451
      %454 = dma.vmem_to_hbm [thread:$0]  %s452, 256, %s3, [#allocation4]
    $region21: #{lm_head_forward.1} parent=1 // pred_fallthru
      _
    // Predicated region
    $region22: #{lm_head_forward.1} parent=1 // pred_check
      _
    $region23: #{lm_head_forward.1} parent=1 // pred_check_branch
      %456 = sbr.rel (0) target = $region25
    $region24: #{lm_head_forward.1} parent=1 // pred_region
      %457 = dma.done [#allocation4], 256
    $region25: #{lm_head_forward.1} parent=1 // pred_fallthru
      _
    %458 = vsyncpa [#allocation3], 1
    %459 = vsyncpa [#allocation4], 1

</llo_original>
